<compile_context>
chip_gen: v5e
topology: v5e:2x2
jax: 0.10.0
libtpu: 0.0.40
codegen_flags: <defaults>
</compile_context>

<pallas_src>
import functools

import jax
import jax.numpy as jnp
from jax.experimental import pallas as pl
from jax.experimental.pallas import tpu as pltpu


def _vqa_head_kernel(x_ref, w_ref, b_ref, o_ref, acc_ref, *,
                     n_tokens, tokens_per_tile, needs_mask):
    """Grid: (num_token_tiles,).

    x_ref:  (B, tn, C) streamed tile of the input
    w_ref:  (1, C)     fused weight  w1 @ w2 @ w3 (resident)
    b_ref:  (1, 1)     fused bias                  (resident)
    o_ref:  (B, 1)     output (written only on the last tile)
    acc_ref:(B, C) f32 running token sum (scratch, persists across tiles)
    """
    t = pl.program_id(0)

    x = x_ref[...].astype(jnp.float32)              # accumulate in f32 always
    if needs_mask:
        # Zero rows of the ragged last tile that lie past N (OOB block padding).
        idx = jax.lax.broadcasted_iota(jnp.int32, (1, tokens_per_tile, 1), 1)
        x = jnp.where(t * tokens_per_tile + idx < n_tokens, x, 0.0)

    @pl.when(t == 0)
    def _init():
        acc_ref[...] = jnp.zeros_like(acc_ref)

    acc_ref[...] += jnp.sum(x, axis=1)              # (B, C) partial token sum

    @pl.when(t == pl.num_programs(0) - 1)
    def _finalize():
        mean_x = acc_ref[...] * (1.0 / n_tokens)    # exact 1/N, applied once
        w = w_ref[...].astype(jnp.float32)          # (1, C)
        # Output width is 1 -> VPU multiply + lane reduction instead of a
        # 1-wide MXU matmul.  Bias added once here (commutes with the mean).
        out = jnp.sum(mean_x * w, axis=-1, keepdims=True) + b_ref[...]
        o_ref[...] = out.astype(o_ref.dtype)


def simple_vqa_head(x, w1, b1, w2, b2, w3, b3, *,
                    tokens_per_tile=None, stream_dtype=None):
    """x: (B, N, C);  w1:(C,C//4) b1:(1,C//4)  w2:(C//4,C//32) b2:(1,C//32)
    w3:(C//32,1) b3:(1,1).  Returns (B, 1) float32.

    stream_dtype=jnp.bfloat16 halves HBM traffic for x on v6e/v7x; the token-sum
    accumulator stays float32 inside the kernel either way."""
    B, N, C = x.shape
    f32 = jnp.float32

    # ---- Algebraic collapse of the three Linears (exact: no activations). ----
    w_eff = (w1.astype(f32) @ w2.astype(f32) @ w3.astype(f32)).reshape(1, C)  # (1, C)
    b_eff = (b1.astype(f32) @ w2.astype(f32) @ w3.astype(f32)
             + b2.astype(f32) @ w3.astype(f32)
             + b3.astype(f32))                                                # (1, 1)

    if stream_dtype is not None:
        x = x.astype(stream_dtype)
        w_eff = w_eff.astype(stream_dtype)
    itemsize = jnp.dtype(x.dtype).itemsize

    # ---- Token tiling: lane-dense (full C) tiles of ~2 MiB, rows multiple of 8.
    if tokens_per_tile is None:
        target_tile_bytes = 2 * 1024 * 1024
        tokens_per_tile = max(1, target_tile_bytes // max(1, B * C * itemsize))
    tn = int(tokens_per_tile)
    if tn >= N:
        tn = N                                   # single full tile
    elif tn % 8 != 0:
        tn = min(max(8, (tn // 8) * 8), N)       # second-minor block dim rule
    num_tiles = -(-N // tn)
    needs_mask = (N % tn) != 0

    kernel = functools.partial(_vqa_head_kernel, n_tokens=N,
                               tokens_per_tile=tn, needs_mask=needs_mask)

    grid_spec = pltpu.PrefetchScalarGridSpec(
        num_scalar_prefetch=0,
        grid=(num_tiles,),
        in_specs=[
            pl.BlockSpec((B, tn, C), lambda t: (0, t, 0)),   # streamed, double-buffered
            pl.BlockSpec((1, C), lambda t: (0, 0)),          # resident fused weight
            pl.BlockSpec((1, 1), lambda t: (0, 0)),          # resident fused bias
        ],
        out_specs=pl.BlockSpec((B, 1), lambda t: (0, 0)),    # resident across reduction
        scratch_shapes=[pltpu.VMEM((B, C), jnp.float32)],    # f32 token-sum accumulator
    )

    tile_bytes = B * tn * C * itemsize
    resident_bytes = (B * C + C + 16) * 4
    vmem_limit = int(min(100 * 1024 * 1024,
                         max(16 * 1024 * 1024, 4 * tile_bytes + resident_bytes)))

    cost = pl.CostEstimate(
        flops=B * N * C + 3 * B * C,
        transcendentals=0,
        bytes_accessed=B * N * C * itemsize + (C + 1) * itemsize + B * 4,
    )

    # NOTE: on v7x a further win is splitting the token range across the two
    # TensorCores (per-core partial accumulators + a finalize sum); not needed
    # for correctness, so kept single-core here.
    return pl.pallas_call(
        kernel,
        out_shape=jax.ShapeDtypeStruct((B, 1), jnp.float32),
        grid_spec=grid_spec,
        compiler_params=pltpu.CompilerParams(
            dimension_semantics=("arbitrary",),   # token axis is a reduction
            vmem_limit_bytes=vmem_limit,
        ),
        cost_estimate=cost,
    )(x, w_eff, b_eff)


def init_params(key, in_channels):
    """Deterministic init mirroring nn.Linear default (uniform +/- 1/sqrt(fan_in))."""
    h1, h2 = in_channels // 4, in_channels // 32
    ks = jax.random.split(key, 6)

    def lin(kw, kb, fan_in, fan_out):
        bound = 1.0 / jnp.sqrt(fan_in)
        w = jax.random.uniform(kw, (fan_in, fan_out), jnp.float32, -bound, bound)
        b = jax.random.uniform(kb, (1, fan_out), jnp.float32, -bound, bound)
        return w, b

    w1, b1 = lin(ks[0], ks[1], in_channels, h1)
    w2, b2 = lin(ks[2], ks[3], h1, h2)
    w3, b3 = lin(ks[4], ks[5], h2, 1)
    return w1, b1, w2, b2, w3, b3


if __name__ == "__main__":
    B, N, C = 2, 80, 256   # small analogue of (batch, tokens, in_channels=9472)

    key = jax.random.PRNGKey(0)
    kx, kp = jax.random.split(key)
    x = jax.random.normal(kx, (B, N, C), jnp.float32)
    w1, b1, w2, b2, w3, b3 = init_params(kp, C)

    # Pure-JAX reference: unfused, layer-by-layer, mean last (matches PyTorch).
    ref = jnp.mean(((x @ w1 + b1) @ w2 + b2) @ w3 + b3, axis=1)   # (B, 1)

    # Multi-tile path: 80 tokens -> tiles of 32/32/16 (exercises the grid, the
    # pl.when-gated accumulator and the ragged-last-tile mask).
    out = jax.block_until_ready(
        simple_vqa_head(x, w1, b1, w2, b2, w3, b3, tokens_per_tile=32))
    assert out.shape == (B, 1)
    assert jnp.allclose(out, ref, atol=1e-3, rtol=1e-3)

    # Auto-tiled path (single tile at these small shapes).
    out_auto = jax.block_until_ready(simple_vqa_head(x, w1, b1, w2, b2, w3, b3))
    assert jnp.allclose(out_auto, ref, atol=1e-3, rtol=1e-3)

    # bf16 streaming path (halves HBM bytes on v6e/v7x); accumulator stays f32.
    out_bf16 = jax.block_until_ready(
        simple_vqa_head(x, w1, b1, w2, b2, w3, b3,
                        tokens_per_tile=32, stream_dtype=jnp.bfloat16))
    assert jnp.allclose(out_bf16, ref, atol=1e-2, rtol=5e-2)

    print("KERNEL_OK")
</pallas_src>

<mosaic_0001>
module attributes {stable_mosaic.version = 11 : i64} {
  func.func @_vqa_head_kernel(%arg0: i32, %arg1: memref<2x32x256xf32, #tpu.memory_space<vmem>>, %arg2: memref<1x256xf32, #tpu.memory_space<vmem>>, %arg3: memref<1x1xf32, #tpu.memory_space<vmem>>, %arg4: memref<2x1xf32, #tpu.memory_space<vmem>>, %arg5: memref<2x256xf32, #tpu.memory_space<vmem>>) attributes {dimension_semantics = [#tpu.dimension_semantics<arbitrary>], iteration_bounds = array<i64: 3>, scalar_prefetch = 0 : i64, scratch_operands = 1 : i64, tpu.core_type = #tpu.core_type<tc>, window_params = [{transform_indices = @transform_0, window_bounds = array<i64: 2, 32, 256>}, {pipeline_mode = #tpu.pipeline_mode<synchronous>, transform_indices = @transform_1, window_bounds = array<i64: 1, 256>}, {pipeline_mode = #tpu.pipeline_mode<synchronous>, transform_indices = @transform_2, window_bounds = array<i64: 1, 1>}, {pipeline_mode = #tpu.pipeline_mode<synchronous>, transform_indices = @transform_3, window_bounds = array<i64: 2, 1>}]} {
    %c0 = arith.constant 0 : index
    %c0_0 = arith.constant 0 : index
    %c0_1 = arith.constant 0 : index
    %0 = vector.load %arg1[%c0, %c0_0, %c0_1] : memref<2x32x256xf32, #tpu.memory_space<vmem>>, vector<2x32x256xf32>
    %1 = tpu.iota {dimensions = array<i32: 1>} : vector<1x32x1xi32>
    %c32_i32 = arith.constant 32 : i32
    %2 = arith.muli %arg0, %c32_i32 : i32
    %3 = vector.broadcast %2 : i32 to vector<1x32x1xi32>
    %4 = arith.addi %3, %1 : vector<1x32x1xi32>
    %c80_i32 = arith.constant 80 : i32
    %5 = vector.broadcast %c80_i32 : i32 to vector<1x32x1xi32>
    %6 = arith.cmpi slt, %4, %5 : vector<1x32x1xi32>
    %cst = arith.constant 0.000000e+00 : f32
    %7 = vector.shape_cast %6 : vector<1x32x1xi1> to vector<1x32x1xi1>
    %8 = vector.broadcast %7 : vector<1x32x1xi1> to vector<2x32x256xi1>
    %9 = vector.broadcast %cst : f32 to vector<2x32x256xf32>
    %10 = arith.select %8, %0, %9 : vector<2x32x256xi1>, vector<2x32x256xf32>
    %c0_i32 = arith.constant 0 : i32
    %11 = arith.cmpi eq, %arg0, %c0_i32 : i32
    %12 = arith.extui %11 : i1 to i32
    %c0_i32_2 = arith.constant 0 : i32
    %13 = arith.cmpi ne, %12, %c0_i32_2 : i32
    scf.if %13 {
      %cst_9 = arith.constant 0.000000e+00 : f32
      %21 = vector.broadcast %cst_9 : f32 to vector<2x256xf32>
      %c0_10 = arith.constant 0 : index
      %c0_11 = arith.constant 0 : index
      %22 = vector.load %arg5[%c0_10, %c0_11] : memref<2x256xf32, #tpu.memory_space<vmem>>, vector<2x256xf32>
      tpu.vector_store %arg5[%c0_10, %c0_11], %21 {strides = array<i32>} : memref<2x256xf32, #tpu.memory_space<vmem>>, vector<2x256xf32>,
    } else {
    }
    %c0_3 = arith.constant 0 : index
    %c0_4 = arith.constant 0 : index
    %14 = vector.load %arg5[%c0_3, %c0_4] : memref<2x256xf32, #tpu.memory_space<vmem>>, vector<2x256xf32>
    %cst_5 = arith.constant dense<0.000000e+00> : vector<2x256xf32>
    %15 = vector.multi_reduction <add>, %10, %cst_5 [1] : vector<2x32x256xf32> to vector<2x256xf32>
    %16 = arith.addf %14, %15 : vector<2x256xf32>
    %c0_6 = arith.constant 0 : index
    %c0_7 = arith.constant 0 : index
    %17 = vector.load %arg5[%c0_6, %c0_7] : memref<2x256xf32, #tpu.memory_space<vmem>>, vector<2x256xf32>
    tpu.vector_store %arg5[%c0_6, %c0_7], %16 {strides = array<i32>} : memref<2x256xf32, #tpu.memory_space<vmem>>, vector<2x256xf32>,
    %c2_i32 = arith.constant 2 : i32
    %18 = arith.cmpi eq, %arg0, %c2_i32 : i32
    %19 = arith.extui %18 : i1 to i32
    %c0_i32_8 = arith.constant 0 : i32
    %20 = arith.cmpi ne, %19, %c0_i32_8 : i32
    scf.if %20 {
      %c0_9 = arith.constant 0 : index
      %c0_10 = arith.constant 0 : index
      %21 = vector.load %arg5[%c0_9, %c0_10] : memref<2x256xf32, #tpu.memory_space<vmem>>, vector<2x256xf32>
      %cst_11 = arith.constant 1.250000e-02 : f32
      %22 = vector.broadcast %cst_11 : f32 to vector<2x256xf32>
      %23 = arith.mulf %21, %22 : vector<2x256xf32>
      %c0_12 = arith.constant 0 : index
      %c0_13 = arith.constant 0 : index
      %24 = vector.load %arg2[%c0_12, %c0_13] : memref<1x256xf32, #tpu.memory_space<vmem>>, vector<1x256xf32>
      %25 = vector.broadcast %24 : vector<1x256xf32> to vector<2x256xf32>
      %26 = arith.mulf %23, %25 : vector<2x256xf32>
      %cst_14 = arith.constant dense<0.000000e+00> : vector<2xf32>
      %27 = vector.multi_reduction <add>, %26, %cst_14 [1] : vector<2x256xf32> to vector<2xf32>
      %28 = vector.shape_cast %27 : vector<2xf32> to vector<2x1xf32>
      %c0_15 = arith.constant 0 : index
      %c0_16 = arith.constant 0 : index
      %29 = vector.load %arg3[%c0_15, %c0_16] : memref<1x1xf32, #tpu.memory_space<vmem>>, vector<1x1xf32>
      %30 = vector.broadcast %29 : vector<1x1xf32> to vector<2x1xf32>
      %31 = arith.addf %28, %30 : vector<2x1xf32>
      %c0_17 = arith.constant 0 : index
      %c0_18 = arith.constant 0 : index
      %32 = vector.load %arg4[%c0_17, %c0_18] : memref<2x1xf32, #tpu.memory_space<vmem>>, vector<2x1xf32>
      tpu.vector_store %arg4[%c0_17, %c0_18], %31 {strides = array<i32>} : memref<2x1xf32, #tpu.memory_space<vmem>>, vector<2x1xf32>,
    } else {
    }
    return
  }
  func.func @transform_0(%arg0: i32) -> (i32, i32, i32) {
    %c0_i32 = arith.constant 0 : i32
    %c0_i32_0 = arith.constant 0 : i32
    %c0_i32_1 = arith.constant 0 : i32
    return %c0_i32, %arg0, %c0_i32_0 : i32, i32, i32
  }
  func.func @transform_1(%arg0: i32) -> (i32, i32) {
    %c0_i32 = arith.constant 0 : i32
    %c0_i32_0 = arith.constant 0 : i32
    %c0_i32_1 = arith.constant 0 : i32
    return %c0_i32, %c0_i32_0 : i32, i32
  }
  func.func @transform_2(%arg0: i32) -> (i32, i32) {
    %c0_i32 = arith.constant 0 : i32
    %c0_i32_0 = arith.constant 0 : i32
    %c0_i32_1 = arith.constant 0 : i32
    return %c0_i32, %c0_i32_0 : i32, i32
  }
  func.func @transform_3(%arg0: i32) -> (i32, i32) {
    %c0_i32 = arith.constant 0 : i32
    %c0_i32_0 = arith.constant 0 : i32
    %c0_i32_1 = arith.constant 0 : i32
    return %c0_i32, %c0_i32_0 : i32, i32
  }
}

</mosaic_0001>

<llo_original>
// kernel: tpu_custom_call.1
$region0: #{tpu_custom_call.1}
  #allocation0 [shape = 'u32[]', space=smem, size = 0x4, offset = 0x4, fixed_abs, tag = 'smem constant byte address 0x4 - core index']
  #allocation1 [shape = 'u32[72,128]{1,0:T(1,128)}', space=vmem, size = 0x9000, scoped, tag = 'internal scratch']
  #allocation2 [shape = 'f32[2,256]{1,0:T(2,128)}', space=vmem, size = 0x800, scoped, tag = 'scratch operand']
  #allocation3 [shape = 'f32[1,1]{1,0:T(1,128)S(1)}', space=vmem, size = 0x200, scoped, tag = 'scoped memory for tpu_custom_call.1']
  #allocation6 [shape = 's32[]', space=sflag, size = 0x4, offset = 0, fixed_abs, tag = 'sflag constant byte address 0x0 - dummy sync flag']
  %s0 = inlined_call_operand.hbm [shape: f32[2,80,256], index: 0, kind: input, shape index: {}]
  %s1 = inlined_call_operand.vmem [shape: f32[1,256], index: 1, kind: input, shape index: {}]
  %s2 = inlined_call_operand.<no memory space> [shape: f32[1,1], index: 2, kind: input, shape index: {}]
  %s3 = inlined_call_operand.vmem [shape: f32[2,1], index: 3, kind: output, shape index: {}]
  %s4 = sld [smem:[#allocation0]]
  $region57: #{tpu_custom_call.1} parent=0
    _
  %s6 = ssub.s32 1, %s4
  %s7 = scalar_select 0, %s6, %s4
  %v8 = vstv %s2
  %9 = vst [vmem:[#allocation3] sm:$0x1] %v8
  $region1: #{tpu_custom_call.1} parent=0
    #allocation4 [shape = 'u8[131072]{0}', space=vmem, size = 0x20000, scoped, tag = 'input window, operand 0']
    #allocation5 [shape = 's32[2]{0}', space=sflag, size = 0x8, scoped, tag = 'scoped memory for tpu_custom_call.1']
    %10 = vsyncpa [#allocation5], 0
    %s11 = scalar_lea.sflag [#allocation5], 1
    %12 = vsyncpa %s11, 0
    loop: start=0, step=1, limit=5
    $region2: #{tpu_custom_call.1} parent=1 // loop_pre_header
      _
    $region3: #{tpu_custom_call.1} parent=1 // loop_header
      %s14 = sphi 0, %s18
      %p15 = scmp.ge.s32.totalorder %s14, 5
      %s24 = sphi 0, %s26
      %s27 = sphi 0, %s24
      %s28 = sphi 0, %s27
      %s44 = sphi 0, %s28
      %s48 = sphi 0, %s48
      %s50 = sphi 0, %s48
      %s51 = sphi 0, %s50
      %s65 = sphi 0, %s51
      %s69 = sphi 0, %s69
      %s71 = sphi 0, %s69
      %s72 = sphi 0, %s71
      %s86 = sphi 0, %s72
      %s90 = sphi 0, %s90
      %s92 = sphi 0, %s90
      %s93 = sphi 0, %s92
      %s107 = sphi 0, %s93
    $region4: #{tpu_custom_call.1} parent=1 // loop_header_branch
      %17 = sbr.rel (%p15) target = $region8
    $region5: #{tpu_custom_call.1} parent=1 // loop_body
      %s19 = ssub.s32 %s14, 1
      %s20 = ssub.s32 %s14, 2
      %s21 = sadd.s32 %s14, 1
      %s22 = ssub.s32 %s14, %s21
      %p23 = scmp.eq.s32.totalorder %s22, 0
      %s25 = sadd.s32 %s24, 1
      %s26 = scalar_select %p23, %s24, %s25
      %p29 = pneg %p23
      %p30 = scmp.eq.s32.totalorder %s14, 2
      %p31 = por %p29, %p30
      %p32 = scmp.ne.s32.totalorder %s24, %s27
      %p33 = scmp.eq.s32.totalorder %s14, 0
      %p34 = por %p32, %p33
      %p35 = scmp.ne.s32.totalorder %s24, %s27
      %p36 = scmp.eq.s32.totalorder %s19, 2
      %p37 = por %p35, %p36
      %p38 = scmp.ne.s32.totalorder %s27, %s28
      %p39 = scmp.eq.s32.totalorder %s19, 0
      %p40 = por %p38, %p39
      %p41 = scmp.ne.s32.totalorder %s27, %s28
      %p42 = scmp.eq.s32.totalorder %s20, 2
      %p43 = por %p41, %p42
      %p45 = scmp.ne.s32.totalorder %s28, %s44
      %p46 = scmp.eq.s32.totalorder %s20, 0
      %p47 = por %p45, %p46
      %s49 = sadd.s32 %s48, 1
      %p52 = scmp.eq.s32.totalorder %s14, 2
      %p53 = scmp.ne.s32.totalorder %s48, %s50
      %p54 = scmp.eq.s32.totalorder %s14, 0
      %p55 = por %p53, %p54
      %p56 = scmp.ne.s32.totalorder %s48, %s50
      %p57 = scmp.eq.s32.totalorder %s19, 2
      %p58 = por %p56, %p57
      %p59 = scmp.ne.s32.totalorder %s50, %s51
      %p60 = scmp.eq.s32.totalorder %s19, 0
      %p61 = por %p59, %p60
      %p62 = scmp.ne.s32.totalorder %s50, %s51
      %p63 = scmp.eq.s32.totalorder %s20, 2
      %p64 = por %p62, %p63
      %p66 = scmp.ne.s32.totalorder %s51, %s65
      %p67 = scmp.eq.s32.totalorder %s20, 0
      %p68 = por %p66, %p67
      %s70 = sadd.s32 %s69, 1
      %p73 = scmp.eq.s32.totalorder %s14, 2
      %p74 = scmp.ne.s32.totalorder %s69, %s71
      %p75 = scmp.eq.s32.totalorder %s14, 0
      %p76 = por %p74, %p75
      %p77 = scmp.ne.s32.totalorder %s69, %s71
      %p78 = scmp.eq.s32.totalorder %s19, 2
      %p79 = por %p77, %p78
      %p80 = scmp.ne.s32.totalorder %s71, %s72
      %p81 = scmp.eq.s32.totalorder %s19, 0
      %p82 = por %p80, %p81
      %p83 = scmp.ne.s32.totalorder %s71, %s72
      %p84 = scmp.eq.s32.totalorder %s20, 2
      %p85 = por %p83, %p84
      %p87 = scmp.ne.s32.totalorder %s72, %s86
      %p88 = scmp.eq.s32.totalorder %s20, 0
      %p89 = por %p87, %p88
      %s91 = sadd.s32 %s90, 1
      %p94 = scmp.eq.s32.totalorder %s14, 2
      %p95 = scmp.ne.s32.totalorder %s90, %s92
      %p96 = scmp.eq.s32.totalorder %s14, 0
      %p97 = por %p95, %p96
      %p98 = scmp.ne.s32.totalorder %s90, %s92
      %p99 = scmp.eq.s32.totalorder %s19, 2
      %p100 = por %p98, %p99
      %p101 = scmp.ne.s32.totalorder %s92, %s93
      %p102 = scmp.eq.s32.totalorder %s19, 0
      %p103 = por %p101, %p102
      %p104 = scmp.ne.s32.totalorder %s92, %s93
      %p105 = scmp.eq.s32.totalorder %s20, 2
      %p106 = por %p104, %p105
      %p108 = scmp.ne.s32.totalorder %s93, %s107
      %p109 = scmp.eq.s32.totalorder %s20, 0
      %p110 = por %p108, %p109
      %p111 = scmp.le.s32.totalorder 1, %s14
      %p112 = scmp.lt.s32.totalorder %s14, 4
      %p113 = pnand %p111, %p112
      %p114 = pneg %p113
      // Predicated region
      $region9: #{tpu_custom_call.1} parent=5 // pred_check
        _
      $region10: #{tpu_custom_call.1} parent=5 // pred_check_branch
        %116 = sbr.rel (%p113) target = $region12
      $region11: #{tpu_custom_call.1} parent=5 // pred_region
        %s117 = ssub.s32 %s14, 1
        // Predicated region
        $region13: #{tpu_custom_call.1} parent=11 // pred_check
          %p118 = pneg %p61
        $region14: #{tpu_custom_call.1} parent=11 // pred_check_branch
          %120 = sbr.rel (%p118) target = $region16
        $region15: #{tpu_custom_call.1} parent=11 // pred_region
          _
        $region16: #{tpu_custom_call.1} parent=11 // pred_fallthru
          _
        // Predicated region
        $region17: #{tpu_custom_call.1} parent=11 // pred_check
          %p121 = pneg %p82
        $region18: #{tpu_custom_call.1} parent=11 // pred_check_branch
          %123 = sbr.rel (%p121) target = $region20
        $region19: #{tpu_custom_call.1} parent=11 // pred_region
          _
        $region20: #{tpu_custom_call.1} parent=11 // pred_fallthru
          _
      $region12: #{tpu_custom_call.1} parent=5 // pred_fallthru
        _
      %p124 = scmp.lt.s32.totalorder %s14, 3
      // Predicated region
      $region21: #{tpu_custom_call.1} parent=5 // pred_check
        %p125 = pneg %p124
      $region22: #{tpu_custom_call.1} parent=5 // pred_check_branch
        %127 = sbr.rel (%p125) target = $region24
      $region23: #{tpu_custom_call.1} parent=5 // pred_region
        // Predicated region
        $region25: #{tpu_custom_call.1} parent=23 // pred_check
          %p128 = pneg %p34
        $region26: #{tpu_custom_call.1} parent=23 // pred_check_branch
          %130 = sbr.rel (%p128) target = $region28
        $region27: #{tpu_custom_call.1} parent=23 // pred_region
          #allocation7 [shape = 'u32[6]{0}', space=smem, size = 0x18, scoped, tag = 'DMA stride descriptor']
          %s131 = sand.u32 %s24, 1
          %s132 = scalar_lea.sflag [#allocation5], %s131
          %s133 = sand.u32 %s24, 1
          %s134 = smul.addr %s133, 128
          %s135 = scalar_lea.vmem [#allocation4], %s134
          %s136 = smul.u32 4, %s14
          %s137 = ssub.s32 10, %s136
          %p138 = scmp.lt.s32.totalorder %s137, 4
          %s139 = scalar_select %p138, %s137, 4
          %s140 = smul.u32 16, %s139
          %s141 = smul.u32 %s140, 2
          %s142 = ssub.s32 128, %s141
          %s143 = sshll.u32 %s142, 4
          %144 = vsyncadd %s132, %s143
          %p145 = scmp.ne.s32.totalorder 0, %s141
          %s146 = smul.addr %s136, 2
          %s147 = smul.addr %s146, 8
          %s148 = scalar_lea.hbm %s0, %s147
          %s149 = smul.u32 16, %s139
          %s150 = smul.u32 %s149, 2
          %s152 = sshll.u32 1, 14
          %s153 = sxor.u32 4294967295, %s152
          %s155 = sld [smem:[#allocation0]]
          %s156 = sadd.s32 2, %s155
          %s158 = sshll.u32 7, 26
          %s159 = sxor.u32 4294967295, %s158
          %s160 = sand.u32 0, %s159
          %s161 = sshll.u32 %s156, 26
          %s162 = sor.u32 %s160, %s161
          %s163 = sshll.u32 %s148, 4
          %s164 = int_to_ptr.hbm [resolvable:$true] %s163
          %s165 = sshll.u32 %s135, 4
          %s166 = int_to_ptr.vmem [resolvable:$true] %s165
          %s167 = sshll.u32 %s150, 4
          %172 = sst [smem:[#allocation7]] 2560
          %s173 = scalar_lea.smem [#allocation7], 1
          %174 = sst [smem:[%s173]] 1024
          %s175 = scalar_lea.smem [#allocation7], 2
          %176 = sst [smem:[%s175]] %s139
          %s177 = scalar_lea.smem [#allocation7], 3
          %178 = sst [smem:[%s177]] 256
          %s179 = scalar_lea.smem [#allocation7], 4
          %180 = sst [smem:[%s179]] 256
          %s181 = scalar_lea.smem [#allocation7], 5
          %182 = sst [smem:[%s181]] 16
          %184 = dma.general (%p145), %s164, %s167, %s166, %s132, [#allocation6], [#allocation7], %s162, 0
        $region28: #{tpu_custom_call.1} parent=23 // pred_fallthru
          _
      $region24: #{tpu_custom_call.1} parent=5 // pred_fallthru
        _
      %p185 = scmp.le.s32.totalorder 1, %s14
      %p186 = scmp.lt.s32.totalorder %s14, 4
      %p187 = pnand %p185, %p186
      %p188 = pneg %p187
      // Predicated region
      $region29: #{tpu_custom_call.1} parent=5 // pred_check
        _
      $region30: #{tpu_custom_call.1} parent=5 // pred_check_branch
        %190 = sbr.rel (%p187) target = $region32
      $region31: #{tpu_custom_call.1} parent=5 // pred_region
        %s191 = ssub.s32 %s14, 1
        %s192 = sand.u32 %s27, 1
        %s193 = scalar_lea.sflag [#allocation5], %s192
        %s194 = sand.u32 %s27, 1
        %s195 = smul.addr %s194, 128
        %s196 = scalar_lea.vmem [#allocation4], %s195
        // Predicated region
        $region33: #{tpu_custom_call.1} parent=31 // pred_check
          %p197 = pneg %p40
        $region34: #{tpu_custom_call.1} parent=31 // pred_check_branch
          %199 = sbr.rel (%p197) target = $region36
        $region35: #{tpu_custom_call.1} parent=31 // pred_region
          %201 = dma.done %s193, 2048
        $region36: #{tpu_custom_call.1} parent=31 // pred_fallthru
          _
        %s202 = sand.u32 %s27, 1
        %s203 = scalar_lea.sflag [#allocation5], %s202
        %s204 = sand.u32 %s27, 1
        %s205 = smul.addr %s204, 128
        %s206 = scalar_lea.vmem [#allocation4], %s205
        %p207 = pneg %p40
        %p208 = pneg %p37
        %p209 = pneg %p61
        %p210 = pneg %p58
        %p211 = pneg %p82
        %p212 = pneg %p79
        %p213 = pneg %p103
        %p214 = pneg %p100
        %s215 = smul.u32 4, %s19
        %s216 = ssub.s32 10, %s215
        %p217 = scmp.lt.s32.totalorder %s216, 4
        %s218 = scalar_select %p217, %s216, 4
        %s219 = smul.u32 16, %s218
        %s220 = smul.u32 %s219, 2
        %v221 = vld [vmem:[%s196] sm:$0xff]
        %v222 = vld [vmem:[%s196 + $0x8] sm:$0xff]
        %v223 = vld [vmem:[%s196 + $0x10] sm:$0xff]
        %v224 = vld [vmem:[%s196 + $0x18] sm:$0xff]
        %v225 = vld [vmem:[%s196 + $0x20] sm:$0xff]
        %v226 = vld [vmem:[%s196 + $0x28] sm:$0xff]
        %v227 = vld [vmem:[%s196 + $0x30] sm:$0xff]
        %v228 = vld [vmem:[%s196 + $0x38] sm:$0xff]
        %v229 = vld [vmem:[%s196 + $0x40] sm:$0xff]
        %v230 = vld [vmem:[%s196 + $0x48] sm:$0xff]
        %v231 = vld [vmem:[%s196 + $0x50] sm:$0xff]
        %v232 = vld [vmem:[%s196 + $0x58] sm:$0xff]
        %v233 = vld [vmem:[%s196 + $0x60] sm:$0xff]
        %v234 = vld [vmem:[%s196 + $0x68] sm:$0xff]
        %v235 = vld [vmem:[%s196 + $0x70] sm:$0xff]
        %v236 = vld [vmem:[%s196 + $0x78] sm:$0xff]
        %v237 = vlaneseq
        %v238 = vshrl.u32 %v237, 7
        %v239 = vadd.s32 %v238, 8
        %v240 = vadd.s32 %v238, 16
        %v241 = vadd.s32 %v238, 24
        %s242 = smul.u32 %s19, 32
        %v243 = vstv %s242
        %v244 = vadd.s32 %v243, %v238
        %v245 = vadd.s32 %v243, %v239
        %v246 = vadd.s32 %v243, %v240
        %v247 = vadd.s32 %v243, %v241
        %vm248 = vcmp.lt.s32.totalorder %v244, 80
        %vm249 = vcmp.lt.s32.totalorder %v245, 80
        %vm250 = vcmp.lt.s32.totalorder %v246, 80
        %vm251 = vcmp.lt.s32.totalorder %v247, 80
        %v252 = vsel %vm248, 1, 0
        %v253 = vsel %vm249, 1, 0
        %v254 = vsel %vm250, 1, 0
        %v255 = vsel %vm251, 1, 0
        %vm256 = vcmp.eq.s32.totalorder %v252, 1
        %vm257 = vcmp.eq.s32.totalorder %v253, 1
        %vm258 = vcmp.eq.s32.totalorder %v254, 1
        %vm259 = vcmp.eq.s32.totalorder %v255, 1
        %v260 = vsel %vm256, %v221, 0.0
        %v261 = vsel %vm256, %v222, 0.0
        %v262 = vsel %vm257, %v223, 0.0
        %v263 = vsel %vm257, %v224, 0.0
        %v264 = vsel %vm258, %v225, 0.0
        %v265 = vsel %vm258, %v226, 0.0
        %v266 = vsel %vm259, %v227, 0.0
        %v267 = vsel %vm259, %v228, 0.0
        %v268 = vsel %vm256, %v229, 0.0
        %v269 = vsel %vm256, %v230, 0.0
        %v270 = vsel %vm257, %v231, 0.0
        %v271 = vsel %vm257, %v232, 0.0
        %v272 = vsel %vm258, %v233, 0.0
        %v273 = vsel %vm258, %v234, 0.0
        %v274 = vsel %vm259, %v235, 0.0
        %v275 = vsel %vm259, %v236, 0.0
        %p276 = scmp.eq.s32.totalorder %s19, 0
        // Predicated region
        $region37: #{tpu_custom_call.1} parent=31 // pred_check
          %p277 = pneg %p276
        $region38: #{tpu_custom_call.1} parent=31 // pred_check_branch
          %279 = sbr.rel (%p277) target = $region40
        $region39: #{tpu_custom_call.1} parent=31 // pred_region
          %280 = vst [vmem:[#allocation2] sm:$0xf] 0.0
        $region40: #{tpu_custom_call.1} parent=31 // pred_fallthru
          _
        %v281 = vld [vmem:[#allocation2] sm:$0xf]
        %v282 = vadd.f32 %v260, %v262
        %v283 = vadd.f32 %v282, %v264
        %v284 = vadd.f32 %v283, %v266
        %v285 = vrot.slane %v284, 4
        %v286 = vadd.f32 %v284, %v285
        %v287 = vrot.slane %v286, 2
        %v288 = vadd.f32 %v286, %v287
        %v289 = vrot.slane %v288, 1
        %v290 = vadd.f32 %v288, %v289
        %v291 = vadd.f32 %v261, %v263
        %v292 = vadd.f32 %v291, %v265
        %v293 = vadd.f32 %v292, %v267
        %v294 = vrot.slane %v293, 4
        %v295 = vadd.f32 %v293, %v294
        %v296 = vrot.slane %v295, 2
        %v297 = vadd.f32 %v295, %v296
        %v298 = vrot.slane %v297, 1
        %v299 = vadd.f32 %v297, %v298
        %v300 = vadd.f32 %v268, %v270
        %v301 = vadd.f32 %v300, %v272
        %v302 = vadd.f32 %v301, %v274
        %v303 = vrot.slane %v302, 4
        %v304 = vadd.f32 %v302, %v303
        %v305 = vrot.slane %v304, 2
        %v306 = vadd.f32 %v304, %v305
        %v307 = vrot.slane %v306, 1
        %v308 = vadd.f32 %v306, %v307
        %v309 = vadd.f32 %v269, %v271
        %v310 = vadd.f32 %v309, %v273
        %v311 = vadd.f32 %v310, %v275
        %v312 = vrot.slane %v311, 4
        %v313 = vadd.f32 %v311, %v312
        %v314 = vrot.slane %v313, 2
        %v315 = vadd.f32 %v313, %v314
        %v316 = vrot.slane %v315, 1
        %v317 = vadd.f32 %v315, %v316
        %v322 = vrot.slane %v299, 6
        %v323 = vrot.slane %v317, 6
        %vm324 = vcmask 1041408
        %v325 = vsel %vm324, %v290, %v322
        %v326 = vsel %vm324, %v308, %v323
        %vm327 = vcmask 1044484
        %v328 = vsel %vm327, %v325, %v325
        %vm329 = vcmask 1046534
        %v330 = vsel %vm329, %v325, %v328
        %v331 = vrot.slane %v326, 7
        %vm332 = vcmask 1041409
        %v333 = vsel %vm332, %v331, %v330
        %vm334 = vcmask 1043459
        %v335 = vsel %vm334, %v331, %v333
        %vm336 = vcmask 1045509
        %v337 = vsel %vm336, %v331, %v335
        %vm338 = vcmask 1047559
        %v339 = vsel %vm338, %v331, %v337
        %v341 = vadd.f32 %v281, %v339
        %342 = vst [vmem:[#allocation2] sm:$0xf] %v341
        %p343 = scmp.eq.s32.totalorder %s19, 2
        // Predicated region
        $region41: #{tpu_custom_call.1} parent=31 // pred_check
          %p344 = pneg %p343
        $region42: #{tpu_custom_call.1} parent=31 // pred_check_branch
          %346 = sbr.rel (%p344) target = $region44
        $region43: #{tpu_custom_call.1} parent=31 // pred_region
          %v347 = vld [vmem:[#allocation2] sm:$0xf]
          %v348 = vmul.f32 %v347, 0.0125
          %v349 = vld [vmem:[%s1] sm:$0x3]
          %v351 = vperm.slane %v349, 0
          %v352 = vperm.slane %v349, 1
          %v353 = vrot.slane %v352, 6
          %v354 = vsel %vm324, %v351, %v353
          %v356 = vmul.f32 %v348, %v354
          %358 = vst [vmem:[#allocation1] ss:$4 sm:$0xff] %v356
          %v359 = vld.sshfl [vmem:[#allocation1] sm:$0xff pattern:$0x73625140]
          %v360 = vld.sshfl [vmem:[#allocation1 + $0x8] sm:$0xff pattern:$0x73625140]
          %v363 = vsel %vm324, %v359, 0.0
          %v364 = vsel %vm324, %v360, 0.0
          %v365 = vadd.f32 %v363, %v364
          %366 = vadd.xlane.f32.xlu0 %v365
          %v367 = vpop.xlane.xlu0 %366
          %v368 = vld [vmem:[#allocation3] sm:$0x1]
          %v370 = vperm.slane %v368, 0
          %v372 = vadd.f32 %v367, %v370
          %vm373 = vcmask 1024
          %374 = vst.msk [vmem:[%s3] sm:$0x3] %vm373, %v372
        $region44: #{tpu_custom_call.1} parent=31 // pred_fallthru
          _
        // Predicated region
        $region45: #{tpu_custom_call.1} parent=31 // pred_check
          %p375 = pneg %p100
        $region46: #{tpu_custom_call.1} parent=31 // pred_check_branch
          %377 = sbr.rel (%p375) target = $region48
        $region47: #{tpu_custom_call.1} parent=31 // pred_region
          _
        $region48: #{tpu_custom_call.1} parent=31 // pred_fallthru
          _
        // Predicated region
        $region49: #{tpu_custom_call.1} parent=31 // pred_check
          %p378 = pneg %p100
        $region50: #{tpu_custom_call.1} parent=31 // pred_check_branch
          %380 = sbr.rel (%p378) target = $region52
        $region51: #{tpu_custom_call.1} parent=31 // pred_region
          _
        $region52: #{tpu_custom_call.1} parent=31 // pred_fallthru
          _
      $region32: #{tpu_custom_call.1} parent=5 // pred_fallthru
        _
      %p381 = scmp.le.s32.totalorder 2, %s14
      // Predicated region
      $region53: #{tpu_custom_call.1} parent=5 // pred_check
        %p382 = pneg %p381
      $region54: #{tpu_custom_call.1} parent=5 // pred_check_branch
        %384 = sbr.rel (%p382) target = $region56
      $region55: #{tpu_custom_call.1} parent=5 // pred_region
        %s385 = ssub.s32 %s14, 2
      $region56: #{tpu_custom_call.1} parent=5 // pred_fallthru
        _
    $region6: #{tpu_custom_call.1} parent=1 // loop_footer
      %s18 = sadd.s32 1, %s14
    $region7: #{tpu_custom_call.1} parent=1 // loop_footer_branch
      %13 = sbr.rel target = $region3
    $region8: #{tpu_custom_call.1} parent=1 // loop_exit
      _
    %386 = vsyncpa [#allocation5], 1
    %s387 = scalar_lea.sflag [#allocation5], 1
    %388 = vsyncpa %s387, 1

</llo_original>
